<compile_context>
chip_gen: v6e
topology: v6e:2x2x1
jax: 0.10.0
libtpu: 0.0.40
codegen_flags: <defaults>
</compile_context>

<pallas_src>
import numpy as np
import jax
import jax.numpy as jnp
from jax.experimental import pallas as pl
from jax.experimental.pallas import tpu as pltpu


def make_cnn_kernel(BT, N, A, C, K, L, Nf, H, E):
    """Builds the lane-dense kernel with static shape info baked in."""
    pad = K // 2
    R = BT * N              # lanes per grid step (batch-tile x sequence)
    f32 = jnp.float32

    def kernel(x_ref, emb_w_ref, emb_b_ref, cw_ref, cb_ref,
               w1_ref, b1_ref, w2_ref, b2_ref, masks_ref, sel_ref, out_ref):
        # ---- embedding: (C, A) @ (A, R) + (C, 1) ----
        h = jnp.dot(emb_w_ref[...], x_ref[...], preferred_element_type=f32)
        h = h + emb_b_ref[...]                                   # (C, R)

        # ---- conv stack in a "strided" lane layout ----
        # After layer l the valid samples of batch element b live at lanes
        # b*N + n * 2**(l+1).  Rolls give neighbor access along the lane axis; the
        # precomputed 0/1 masks reproduce zero padding and stop cross-batch leakage.
        s = 1                                                     # current sample stride
        for l in range(L):
            taps = []
            for k in range(K):
                off = k - pad
                if off == 0:
                    taps.append(h)
                else:
                    t = pltpu.roll(h, shift=(-off * s) % R, axis=1)
                    m = masks_ref[pl.ds(l * K + k, 1), :]         # (1, R) constant 0/1
                    taps.append(t * m)
            stacked = jnp.concatenate(taps, axis=0)               # (K*C, R)
            # One fused matmul per layer instead of K accumulating ones.
            h = jnp.dot(cw_ref[l], stacked, preferred_element_type=f32) + cb_ref[l]
            h = jnp.maximum(h, 0.0)                               # bias + ReLU
            # AvgPool1d(2): average each valid lane with its neighbor `s` lanes right.
            h = 0.5 * (h + pltpu.roll(h, shift=(R - s) % R, axis=1))
            s *= 2

        # ---- readout MLP: Linear(flat -> H) -> ReLU -> Linear(H -> E) ----
        # Gather the Nf valid lanes per batch element into a compact (Nf*C, BT)
        # operand, then a single matmul per MLP layer.
        feats = [jnp.dot(h, sel_ref[n], preferred_element_type=f32)   # (C, BT)
                 for n in range(Nf)]
        F = jnp.concatenate(feats, axis=0)                        # (Nf*C, BT)
        z = jnp.dot(w1_ref[...], F, preferred_element_type=f32) + b1_ref[...]
        z = jnp.maximum(z, 0.0)                                   # (H, BT)
        out = jnp.dot(w2_ref[...], z, preferred_element_type=f32) + b2_ref[...]
        out_ref[...] = out.astype(out_ref.dtype)                  # (E, BT)

    return kernel


def _pick_batch_tile(B, N):
    """1 grid step on single-TC chips (v5e/v6e); 2 steps on multi-TC v7x."""
    kind = ""
    try:
        kind = jax.devices()[0].device_kind.lower().replace(" ", "")
    except Exception:
        pass
    multi_tc = ("v7" in kind) or ("tpu7" in kind)
    if multi_tc and B % 2 == 0:
        bt = B // 2
        if (bt * N) % 128 == 0:      # keep the x / activation blocks lane-aligned
            return bt
    return B


def cnn_forward(x, emb_w, emb_b, conv_w, conv_b, w1, b1, w2, b2, *, batch_tile=None):
    """x: (B, N, A).  Weights are already in kernel layout (see __main__)."""
    B, N, A = x.shape
    C = emb_w.shape[0]
    L = conv_w.shape[0]
    KC = conv_w.shape[2]
    K = KC // C
    H = w1.shape[0]
    E = w2.shape[0]
    assert K % 2 == 1, "odd kernel_size assumed (padding = K//2 keeps length)"
    assert N % (2 ** L) == 0, "sequence length must be divisible by 2**layers"
    Nf = N // (2 ** L)
    S = 2 ** L
    pad = K // 2

    if batch_tile is None:
        batch_tile = _pick_batch_tile(B, N)
    BT = batch_tile
    assert B % BT == 0
    G = B // BT
    R = BT * N

    # Static per-tap boundary masks (depend only on l, k, N) and readout gather
    # matrices (one-hot columns selecting lanes b*N + n*S), precomputed host-side.
    p = np.arange(R, dtype=np.int64) % N
    masks_np = np.zeros((L * K, R), np.float32)
    for l in range(L):
        s = 2 ** l
        for k in range(K):
            q = p + (k - pad) * s
            masks_np[l * K + k] = ((q >= 0) & (q < N)).astype(np.float32)
    sel_np = np.zeros((Nf, R, BT), np.float32)
    for n in range(Nf):
        for b in range(BT):
            sel_np[n, b * N + n * S, b] = 1.0
    masks = jnp.asarray(masks_np)
    sel = jnp.asarray(sel_np)

    # Lane-dense input: (A, B*N), column index = b*N + n.
    x2 = jnp.transpose(x.reshape(B * N, A))

    kernel = make_cnn_kernel(BT, N, A, C, K, L, Nf, H, E)

    out3 = pl.pallas_call(
        kernel,
        out_shape=jax.ShapeDtypeStruct((G, E, BT), jnp.float32),
        grid=(G,),
        in_specs=[
            pl.BlockSpec((A, R), lambda t: (0, t)),              # x (lane-dense batch tile)
            pl.BlockSpec((C, A), lambda t: (0, 0)),              # embedding weight (C, A)
            pl.BlockSpec((C, 1), lambda t: (0, 0)),              # embedding bias
            pl.BlockSpec((L, C, KC), lambda t: (0, 0, 0)),       # conv weights (fused taps)
            pl.BlockSpec((L, C, 1), lambda t: (0, 0, 0)),        # conv biases
            pl.BlockSpec((H, Nf * C), lambda t: (0, 0)),         # readout w1 (permuted)
            pl.BlockSpec((H, 1), lambda t: (0, 0)),              # readout b1
            pl.BlockSpec((E, H), lambda t: (0, 0)),              # readout w2
            pl.BlockSpec((E, 1), lambda t: (0, 0)),              # readout b2
            pl.BlockSpec((L * K, R), lambda t: (0, 0)),          # static tap masks
            pl.BlockSpec((Nf, R, BT), lambda t: (0, 0, 0)),      # readout gather one-hots
        ],
        out_specs=pl.BlockSpec((None, E, BT), lambda t: (t, 0, 0)),
        compiler_params=pltpu.CompilerParams(
            dimension_semantics=("parallel",)),
    )(x2, emb_w, emb_b, conv_w, conv_b, w1, b1, w2, b2, masks, sel)

    # (G, E, BT) -> (B, E)
    return jnp.transpose(out3, (0, 2, 1)).reshape(B, E)


def torch_style_reference(x, emb_w_t, emb_b_t, conv_w_t, conv_b_t,
                          w1_t, b1_t, w2_t, b2_t, L, pad):
    """Pure-JAX replica of the PyTorch forward (NCW layout, torch weight shapes)."""
    B = x.shape[0]
    h = x @ emb_w_t.T + emb_b_t                     # (B, N, C)
    h = jnp.transpose(h, (0, 2, 1))                 # (B, C, N)
    for l in range(L):
        h = jax.lax.conv_general_dilated(
            h, conv_w_t[l], window_strides=(1,), padding=[(pad, pad)],
            dimension_numbers=('NCH', 'OIH', 'NCH'))
        h = h + conv_b_t[l][None, :, None]
        h = jnp.maximum(h, 0.0)
        Bc, Cc, Nl = h.shape
        h = h.reshape(Bc, Cc, Nl // 2, 2).mean(axis=-1)
    flat = h.reshape(B, -1)                         # (B, C*Nf), (c, n)-major
    z = jnp.maximum(flat @ w1_t.T + b1_t, 0.0)
    return z @ w2_t.T + b2_t


if __name__ == "__main__":
    # Small shapes consistent with the module:
    B, N, A = 16, 16, 4         # batch, len_sequence, alphabet_size
    C = 8                       # channels
    E = 32                      # embedding_size (hidden == out in readout MLP)
    L, K = 3, 3                 # conv layers, kernel_size
    pad = K // 2
    Nf = N // (2 ** L)          # sequence length after 3 avg-pools = 2
    flat = C * Nf               # 16
    H = E                       # MLP hidden size

    key = jax.random.PRNGKey(0)
    ks = jax.random.split(key, 10)
    # Torch-style parameter shapes (deterministic synthetic init)
    x        = jax.random.normal(ks[0], (B, N, A), jnp.float32)
    emb_w_t  = 0.3 * jax.random.normal(ks[1], (C, A), jnp.float32)        # (out, in)
    emb_b_t  = 0.1 * jax.random.normal(ks[2], (C,), jnp.float32)
    conv_w_t = 0.3 * jax.random.normal(ks[3], (L, C, C, K), jnp.float32)  # (O, I, K)
    conv_b_t = 0.1 * jax.random.normal(ks[4], (L, C), jnp.float32)
    w1_t     = 0.3 * jax.random.normal(ks[5], (H, flat), jnp.float32)     # flat idx = c*Nf + n
    b1_t     = 0.1 * jax.random.normal(ks[6], (H,), jnp.float32)
    w2_t     = 0.3 * jax.random.normal(ks[7], (E, H), jnp.float32)
    b2_t     = 0.1 * jax.random.normal(ks[8], (E,), jnp.float32)

    # Re-layout for the lane-dense (channel-on-sublane) kernel (pure JAX glue):
    emb_w  = emb_w_t                                              # (C, A)
    emb_b  = emb_b_t[:, None]                                     # (C, 1)
    # conv: column index k*C_in + c_in to match in-kernel tap stacking.
    conv_w = jnp.transpose(conv_w_t, (0, 1, 3, 2)).reshape(L, C, K * C)   # (L, C_out, K*C_in)
    conv_b = conv_b_t[:, :, None]                                 # (L, C, 1)
    # w1: torch columns indexed (c*Nf + n) -> kernel columns (n*C + c)
    w1     = jnp.transpose(w1_t.reshape(H, C, Nf), (0, 2, 1)).reshape(H, Nf * C)
    b1     = b1_t[:, None]                                        # (H, 1)
    w2     = w2_t                                                 # (E, H)
    b2     = b2_t[:, None]                                        # (E, 1)

    out = cnn_forward(x, emb_w, emb_b, conv_w, conv_b, w1, b1, w2, b2)
    out = jax.block_until_ready(out)

    ref = torch_style_reference(x, emb_w_t, emb_b_t, conv_w_t, conv_b_t,
                                w1_t, b1_t, w2_t, b2_t, L, pad)
    if not bool(jnp.allclose(out, ref, atol=2e-3, rtol=2e-3)):
        raise AssertionError("Pallas kernel output does not match reference")
    print("KERNEL_OK")
</pallas_src>

<mosaic_0001>
module attributes {stable_mosaic.version = 11 : i64} {
  func.func @kernel(%arg0: i32, %arg1: memref<4x256xf32, #tpu.memory_space<vmem>>, %arg2: memref<8x4xf32, #tpu.memory_space<vmem>>, %arg3: memref<8x1xf32, #tpu.memory_space<vmem>>, %arg4: memref<3x8x24xf32, #tpu.memory_space<vmem>>, %arg5: memref<3x8x1xf32, #tpu.memory_space<vmem>>, %arg6: memref<32x16xf32, #tpu.memory_space<vmem>>, %arg7: memref<32x1xf32, #tpu.memory_space<vmem>>, %arg8: memref<32x32xf32, #tpu.memory_space<vmem>>, %arg9: memref<32x1xf32, #tpu.memory_space<vmem>>, %arg10: memref<9x256xf32, #tpu.memory_space<vmem>>, %arg11: memref<2x256x16xf32, #tpu.memory_space<vmem>>, %arg12: memref<1x32x16xf32, #tpu.memory_space<vmem>>) attributes {dimension_semantics = [#tpu.dimension_semantics<parallel>], iteration_bounds = array<i64: 1>, scalar_prefetch = 0 : i64, scratch_operands = 0 : i64, tpu.core_type = #tpu.core_type<tc>, window_params = [{transform_indices = @transform_0, window_bounds = array<i64: 4, 256>}, {pipeline_mode = #tpu.pipeline_mode<synchronous>, transform_indices = @transform_1, window_bounds = array<i64: 8, 4>}, {pipeline_mode = #tpu.pipeline_mode<synchronous>, transform_indices = @transform_2, window_bounds = array<i64: 8, 1>}, {pipeline_mode = #tpu.pipeline_mode<synchronous>, transform_indices = @transform_3, window_bounds = array<i64: 3, 8, 24>}, {pipeline_mode = #tpu.pipeline_mode<synchronous>, transform_indices = @transform_4, window_bounds = array<i64: 3, 8, 1>}, {pipeline_mode = #tpu.pipeline_mode<synchronous>, transform_indices = @transform_5, window_bounds = array<i64: 32, 16>}, {pipeline_mode = #tpu.pipeline_mode<synchronous>, transform_indices = @transform_6, window_bounds = array<i64: 32, 1>}, {pipeline_mode = #tpu.pipeline_mode<synchronous>, transform_indices = @transform_7, window_bounds = array<i64: 32, 32>}, {pipeline_mode = #tpu.pipeline_mode<synchronous>, transform_indices = @transform_8, window_bounds = array<i64: 32, 1>}, {pipeline_mode = #tpu.pipeline_mode<synchronous>, transform_indices = @transform_9, window_bounds = array<i64: 9, 256>}, {pipeline_mode = #tpu.pipeline_mode<synchronous>, transform_indices = @transform_10, window_bounds = array<i64: 2, 256, 16>}, {transform_indices = @transform_11, window_bounds = array<i64: 1, 32, 16>}]} {
    %c0 = arith.constant 0 : index
    %c0_0 = arith.constant 0 : index
    %0 = vector.load %arg2[%c0, %c0_0] : memref<8x4xf32, #tpu.memory_space<vmem>>, vector<8x4xf32>
    %c0_1 = arith.constant 0 : index
    %c0_2 = arith.constant 0 : index
    %1 = vector.load %arg1[%c0_1, %c0_2] : memref<4x256xf32, #tpu.memory_space<vmem>>, vector<4x256xf32>
    %cst = arith.constant dense<0.000000e+00> : vector<8x256xf32>
    %2 = tpu.matmul %0, %1, %cst {dimension_numbers = #tpu.dot_dimension_numbers<[1], [0], [0], [1], [0, 0, 1, 1], [], []>} : vector<8x4xf32>, vector<4x256xf32>, vector<8x256xf32> -> vector<8x256xf32>
    %c0_3 = arith.constant 0 : index
    %c0_4 = arith.constant 0 : index
    %3 = vector.load %arg3[%c0_3, %c0_4] : memref<8x1xf32, #tpu.memory_space<vmem>>, vector<8x1xf32>
    %4 = vector.broadcast %3 : vector<8x1xf32> to vector<8x256xf32>
    %5 = arith.addf %2, %4 : vector<8x256xf32>
    %c1_i32 = arith.constant 1 : i32
    %6 = tpu.dynamic_rotate %5 by %c1_i32 dim 1 : vector<8x256xf32>, i32 -> vector<8x256xf32>
    %c0_5 = arith.constant 0 : index
    %c0_6 = arith.constant 0 : index
    %7 = vector.load %arg10[%c0_5, %c0_6] : memref<9x256xf32, #tpu.memory_space<vmem>>, vector<1x256xf32>
    %8 = vector.broadcast %7 : vector<1x256xf32> to vector<8x256xf32>
    %9 = arith.mulf %6, %8 : vector<8x256xf32>
    %c255_i32 = arith.constant 255 : i32
    %10 = tpu.dynamic_rotate %5 by %c255_i32 dim 1 : vector<8x256xf32>, i32 -> vector<8x256xf32>
    %c2 = arith.constant 2 : index
    %c0_7 = arith.constant 0 : index
    %11 = vector.load %arg10[%c2, %c0_7] : memref<9x256xf32, #tpu.memory_space<vmem>>, vector<1x256xf32>
    %12 = vector.broadcast %11 : vector<1x256xf32> to vector<8x256xf32>
    %13 = arith.mulf %10, %12 : vector<8x256xf32>
    %14 = tpu.concatenate %9, %5, %13 in 0 : vector<8x256xf32>, vector<8x256xf32>, vector<8x256xf32> -> vector<24x256xf32>
    %c0_8 = arith.constant 0 : index
    %c0_9 = arith.constant 0 : index
    %c0_10 = arith.constant 0 : index
    %15 = vector.load %arg4[%c0_8, %c0_9, %c0_10] : memref<3x8x24xf32, #tpu.memory_space<vmem>>, vector<1x8x24xf32>
    %16 = vector.shape_cast %15 : vector<1x8x24xf32> to vector<8x24xf32>
    %cst_11 = arith.constant dense<0.000000e+00> : vector<8x256xf32>
    %17 = tpu.matmul %16, %14, %cst_11 {dimension_numbers = #tpu.dot_dimension_numbers<[1], [0], [0], [1], [0, 0, 1, 1], [], []>} : vector<8x24xf32>, vector<24x256xf32>, vector<8x256xf32> -> vector<8x256xf32>
    %c0_12 = arith.constant 0 : index
    %c0_13 = arith.constant 0 : index
    %c0_14 = arith.constant 0 : index
    %18 = vector.load %arg5[%c0_12, %c0_13, %c0_14] : memref<3x8x1xf32, #tpu.memory_space<vmem>>, vector<1x8x1xf32>
    %19 = vector.shape_cast %18 : vector<1x8x1xf32> to vector<8x1xf32>
    %20 = vector.broadcast %19 : vector<8x1xf32> to vector<8x256xf32>
    %21 = arith.addf %17, %20 : vector<8x256xf32>
    %cst_15 = arith.constant 0.000000e+00 : f32
    %22 = vector.broadcast %cst_15 : f32 to vector<8x256xf32>
    %23 = arith.maximumf %21, %22 : vector<8x256xf32>
    %c255_i32_16 = arith.constant 255 : i32
    %24 = tpu.dynamic_rotate %23 by %c255_i32_16 dim 1 : vector<8x256xf32>, i32 -> vector<8x256xf32>
    %25 = arith.addf %23, %24 : vector<8x256xf32>
    %cst_17 = arith.constant 5.000000e-01 : f32
    %26 = vector.broadcast %cst_17 : f32 to vector<8x256xf32>
    %27 = arith.mulf %26, %25 : vector<8x256xf32>
    %c2_i32 = arith.constant 2 : i32
    %28 = tpu.dynamic_rotate %27 by %c2_i32 dim 1 : vector<8x256xf32>, i32 -> vector<8x256xf32>
    %c3 = arith.constant 3 : index
    %c0_18 = arith.constant 0 : index
    %29 = vector.load %arg10[%c3, %c0_18] : memref<9x256xf32, #tpu.memory_space<vmem>>, vector<1x256xf32>
    %30 = vector.broadcast %29 : vector<1x256xf32> to vector<8x256xf32>
    %31 = arith.mulf %28, %30 : vector<8x256xf32>
    %c254_i32 = arith.constant 254 : i32
    %32 = tpu.dynamic_rotate %27 by %c254_i32 dim 1 : vector<8x256xf32>, i32 -> vector<8x256xf32>
    %c5 = arith.constant 5 : index
    %c0_19 = arith.constant 0 : index
    %33 = vector.load %arg10[%c5, %c0_19] : memref<9x256xf32, #tpu.memory_space<vmem>>, vector<1x256xf32>
    %34 = vector.broadcast %33 : vector<1x256xf32> to vector<8x256xf32>
    %35 = arith.mulf %32, %34 : vector<8x256xf32>
    %36 = tpu.concatenate %31, %27, %35 in 0 : vector<8x256xf32>, vector<8x256xf32>, vector<8x256xf32> -> vector<24x256xf32>
    %c1 = arith.constant 1 : index
    %c0_20 = arith.constant 0 : index
    %c0_21 = arith.constant 0 : index
    %37 = vector.load %arg4[%c1, %c0_20, %c0_21] : memref<3x8x24xf32, #tpu.memory_space<vmem>>, vector<1x8x24xf32>
    %38 = vector.shape_cast %37 : vector<1x8x24xf32> to vector<8x24xf32>
    %cst_22 = arith.constant dense<0.000000e+00> : vector<8x256xf32>
    %39 = tpu.matmul %38, %36, %cst_22 {dimension_numbers = #tpu.dot_dimension_numbers<[1], [0], [0], [1], [0, 0, 1, 1], [], []>} : vector<8x24xf32>, vector<24x256xf32>, vector<8x256xf32> -> vector<8x256xf32>
    %c1_23 = arith.constant 1 : index
    %c0_24 = arith.constant 0 : index
    %c0_25 = arith.constant 0 : index
    %40 = vector.load %arg5[%c1_23, %c0_24, %c0_25] : memref<3x8x1xf32, #tpu.memory_space<vmem>>, vector<1x8x1xf32>
    %41 = vector.shape_cast %40 : vector<1x8x1xf32> to vector<8x1xf32>
    %42 = vector.broadcast %41 : vector<8x1xf32> to vector<8x256xf32>
    %43 = arith.addf %39, %42 : vector<8x256xf32>
    %cst_26 = arith.constant 0.000000e+00 : f32
    %44 = vector.broadcast %cst_26 : f32 to vector<8x256xf32>
    %45 = arith.maximumf %43, %44 : vector<8x256xf32>
    %c254_i32_27 = arith.constant 254 : i32
    %46 = tpu.dynamic_rotate %45 by %c254_i32_27 dim 1 : vector<8x256xf32>, i32 -> vector<8x256xf32>
    %47 = arith.addf %45, %46 : vector<8x256xf32>
    %cst_28 = arith.constant 5.000000e-01 : f32
    %48 = vector.broadcast %cst_28 : f32 to vector<8x256xf32>
    %49 = arith.mulf %48, %47 : vector<8x256xf32>
    %c4_i32 = arith.constant 4 : i32
    %50 = tpu.dynamic_rotate %49 by %c4_i32 dim 1 : vector<8x256xf32>, i32 -> vector<8x256xf32>
    %c6 = arith.constant 6 : index
    %c0_29 = arith.constant 0 : index
    %51 = vector.load %arg10[%c6, %c0_29] : memref<9x256xf32, #tpu.memory_space<vmem>>, vector<1x256xf32>
    %52 = vector.broadcast %51 : vector<1x256xf32> to vector<8x256xf32>
    %53 = arith.mulf %50, %52 : vector<8x256xf32>
    %c252_i32 = arith.constant 252 : i32
    %54 = tpu.dynamic_rotate %49 by %c252_i32 dim 1 : vector<8x256xf32>, i32 -> vector<8x256xf32>
    %c8 = arith.constant 8 : index
    %c0_30 = arith.constant 0 : index
    %55 = vector.load %arg10[%c8, %c0_30] : memref<9x256xf32, #tpu.memory_space<vmem>>, vector<1x256xf32>
    %56 = vector.broadcast %55 : vector<1x256xf32> to vector<8x256xf32>
    %57 = arith.mulf %54, %56 : vector<8x256xf32>
    %58 = tpu.concatenate %53, %49, %57 in 0 : vector<8x256xf32>, vector<8x256xf32>, vector<8x256xf32> -> vector<24x256xf32>
    %c2_31 = arith.constant 2 : index
    %c0_32 = arith.constant 0 : index
    %c0_33 = arith.constant 0 : index
    %59 = vector.load %arg4[%c2_31, %c0_32, %c0_33] : memref<3x8x24xf32, #tpu.memory_space<vmem>>, vector<1x8x24xf32>
    %60 = vector.shape_cast %59 : vector<1x8x24xf32> to vector<8x24xf32>
    %cst_34 = arith.constant dense<0.000000e+00> : vector<8x256xf32>
    %61 = tpu.matmul %60, %58, %cst_34 {dimension_numbers = #tpu.dot_dimension_numbers<[1], [0], [0], [1], [0, 0, 1, 1], [], []>} : vector<8x24xf32>, vector<24x256xf32>, vector<8x256xf32> -> vector<8x256xf32>
    %c2_35 = arith.constant 2 : index
    %c0_36 = arith.constant 0 : index
    %c0_37 = arith.constant 0 : index
    %62 = vector.load %arg5[%c2_35, %c0_36, %c0_37] : memref<3x8x1xf32, #tpu.memory_space<vmem>>, vector<1x8x1xf32>
    %63 = vector.shape_cast %62 : vector<1x8x1xf32> to vector<8x1xf32>
    %64 = vector.broadcast %63 : vector<8x1xf32> to vector<8x256xf32>
    %65 = arith.addf %61, %64 : vector<8x256xf32>
    %cst_38 = arith.constant 0.000000e+00 : f32
    %66 = vector.broadcast %cst_38 : f32 to vector<8x256xf32>
    %67 = arith.maximumf %65, %66 : vector<8x256xf32>
    %c252_i32_39 = arith.constant 252 : i32
    %68 = tpu.dynamic_rotate %67 by %c252_i32_39 dim 1 : vector<8x256xf32>, i32 -> vector<8x256xf32>
    %69 = arith.addf %67, %68 : vector<8x256xf32>
    %cst_40 = arith.constant 5.000000e-01 : f32
    %70 = vector.broadcast %cst_40 : f32 to vector<8x256xf32>
    %71 = arith.mulf %70, %69 : vector<8x256xf32>
    %c0_41 = arith.constant 0 : index
    %c0_42 = arith.constant 0 : index
    %c0_43 = arith.constant 0 : index
    %72 = vector.load %arg11[%c0_41, %c0_42, %c0_43] : memref<2x256x16xf32, #tpu.memory_space<vmem>>, vector<1x256x16xf32>
    %73 = vector.shape_cast %72 : vector<1x256x16xf32> to vector<256x16xf32>
    %cst_44 = arith.constant dense<0.000000e+00> : vector<8x16xf32>
    %74 = tpu.matmul %71, %73, %cst_44 {dimension_numbers = #tpu.dot_dimension_numbers<[1], [0], [0], [1], [0, 0, 1, 1], [], []>} : vector<8x256xf32>, vector<256x16xf32>, vector<8x16xf32> -> vector<8x16xf32>
    %c1_45 = arith.constant 1 : index
    %c0_46 = arith.constant 0 : index
    %c0_47 = arith.constant 0 : index
    %75 = vector.load %arg11[%c1_45, %c0_46, %c0_47] : memref<2x256x16xf32, #tpu.memory_space<vmem>>, vector<1x256x16xf32>
    %76 = vector.shape_cast %75 : vector<1x256x16xf32> to vector<256x16xf32>
    %cst_48 = arith.constant dense<0.000000e+00> : vector<8x16xf32>
    %77 = tpu.matmul %71, %76, %cst_48 {dimension_numbers = #tpu.dot_dimension_numbers<[1], [0], [0], [1], [0, 0, 1, 1], [], []>} : vector<8x256xf32>, vector<256x16xf32>, vector<8x16xf32> -> vector<8x16xf32>
    %78 = tpu.concatenate %74, %77 in 0 : vector<8x16xf32>, vector<8x16xf32> -> vector<16x16xf32>
    %c0_49 = arith.constant 0 : index
    %c0_50 = arith.constant 0 : index
    %79 = vector.load %arg6[%c0_49, %c0_50] : memref<32x16xf32, #tpu.memory_space<vmem>>, vector<32x16xf32>
    %cst_51 = arith.constant dense<0.000000e+00> : vector<32x16xf32>
    %80 = tpu.matmul %79, %78, %cst_51 {dimension_numbers = #tpu.dot_dimension_numbers<[1], [0], [0], [1], [0, 0, 1, 1], [], []>} : vector<32x16xf32>, vector<16x16xf32>, vector<32x16xf32> -> vector<32x16xf32>
    %c0_52 = arith.constant 0 : index
    %c0_53 = arith.constant 0 : index
    %81 = vector.load %arg7[%c0_52, %c0_53] : memref<32x1xf32, #tpu.memory_space<vmem>>, vector<32x1xf32>
    %82 = vector.broadcast %81 : vector<32x1xf32> to vector<32x16xf32>
    %83 = arith.addf %80, %82 : vector<32x16xf32>
    %cst_54 = arith.constant 0.000000e+00 : f32
    %84 = vector.broadcast %cst_54 : f32 to vector<32x16xf32>
    %85 = arith.maximumf %83, %84 : vector<32x16xf32>
    %c0_55 = arith.constant 0 : index
    %c0_56 = arith.constant 0 : index
    %86 = vector.load %arg8[%c0_55, %c0_56] : memref<32x32xf32, #tpu.memory_space<vmem>>, vector<32x32xf32>
    %cst_57 = arith.constant dense<0.000000e+00> : vector<32x16xf32>
    %87 = tpu.matmul %86, %85, %cst_57 {dimension_numbers = #tpu.dot_dimension_numbers<[1], [0], [0], [1], [0, 0, 1, 1], [], []>} : vector<32x32xf32>, vector<32x16xf32>, vector<32x16xf32> -> vector<32x16xf32>
    %c0_58 = arith.constant 0 : index
    %c0_59 = arith.constant 0 : index
    %88 = vector.load %arg9[%c0_58, %c0_59] : memref<32x1xf32, #tpu.memory_space<vmem>>, vector<32x1xf32>
    %89 = vector.broadcast %88 : vector<32x1xf32> to vector<32x16xf32>
    %90 = arith.addf %87, %89 : vector<32x16xf32>
    %c0_60 = arith.constant 0 : index
    %c0_61 = arith.constant 0 : index
    %c0_62 = arith.constant 0 : index
    %91 = vector.load %arg12[%c0_60, %c0_61, %c0_62] : memref<1x32x16xf32, #tpu.memory_space<vmem>>, vector<1x32x16xf32>
    %92 = vector.shape_cast %91 : vector<1x32x16xf32> to vector<32x16xf32>
    %93 = vector.shape_cast %90 : vector<32x16xf32> to vector<1x32x16xf32>
    tpu.vector_store %arg12[%c0_60, %c0_61, %c0_62], %93 {strides = array<i32>} : memref<1x32x16xf32, #tpu.memory_space<vmem>>, vector<1x32x16xf32>,
    return
  }
  func.func @transform_0(%arg0: i32) -> (i32, i32) {
    %c0_i32 = arith.constant 0 : i32
    %c0_i32_0 = arith.constant 0 : i32
    return %c0_i32, %arg0 : i32, i32
  }
  func.func @transform_1(%arg0: i32) -> (i32, i32) {
    %c0_i32 = arith.constant 0 : i32
    %c0_i32_0 = arith.constant 0 : i32
    %c0_i32_1 = arith.constant 0 : i32
    return %c0_i32, %c0_i32_0 : i32, i32
  }
  func.func @transform_2(%arg0: i32) -> (i32, i32) {
    %c0_i32 = arith.constant 0 : i32
    %c0_i32_0 = arith.constant 0 : i32
    %c0_i32_1 = arith.constant 0 : i32
    return %c0_i32, %c0_i32_0 : i32, i32
  }
  func.func @transform_3(%arg0: i32) -> (i32, i32, i32) {
    %c0_i32 = arith.constant 0 : i32
    %c0_i32_0 = arith.constant 0 : i32
    %c0_i32_1 = arith.constant 0 : i32
    %c0_i32_2 = arith.constant 0 : i32
    return %c0_i32, %c0_i32_0, %c0_i32_1 : i32, i32, i32
  }
  func.func @transform_4(%arg0: i32) -> (i32, i32, i32) {
    %c0_i32 = arith.constant 0 : i32
    %c0_i32_0 = arith.constant 0 : i32
    %c0_i32_1 = arith.constant 0 : i32
    %c0_i32_2 = arith.constant 0 : i32
    return %c0_i32, %c0_i32_0, %c0_i32_1 : i32, i32, i32
  }
  func.func @transform_5(%arg0: i32) -> (i32, i32) {
    %c0_i32 = arith.constant 0 : i32
    %c0_i32_0 = arith.constant 0 : i32
    %c0_i32_1 = arith.constant 0 : i32
    return %c0_i32, %c0_i32_0 : i32, i32
  }
  func.func @transform_6(%arg0: i32) -> (i32, i32) {
    %c0_i32 = arith.constant 0 : i32
    %c0_i32_0 = arith.constant 0 : i32
    %c0_i32_1 = arith.constant 0 : i32
    return %c0_i32, %c0_i32_0 : i32, i32
  }
  func.func @transform_7(%arg0: i32) -> (i32, i32) {
    %c0_i32 = arith.constant 0 : i32
    %c0_i32_0 = arith.constant 0 : i32
    %c0_i32_1 = arith.constant 0 : i32
    return %c0_i32, %c0_i32_0 : i32, i32
  }
  func.func @transform_8(%arg0: i32) -> (i32, i32) {
    %c0_i32 = arith.constant 0 : i32
    %c0_i32_0 = arith.constant 0 : i32
    %c0_i32_1 = arith.constant 0 : i32
    return %c0_i32, %c0_i32_0 : i32, i32
  }
  func.func @transform_9(%arg0: i32) -> (i32, i32) {
    %c0_i32 = arith.constant 0 : i32
    %c0_i32_0 = arith.constant 0 : i32
    %c0_i32_1 = arith.constant 0 : i32
    return %c0_i32, %c0_i32_0 : i32, i32
  }
  func.func @transform_10(%arg0: i32) -> (i32, i32, i32) {
    %c0_i32 = arith.constant 0 : i32
    %c0_i32_0 = arith.constant 0 : i32
    %c0_i32_1 = arith.constant 0 : i32
    %c0_i32_2 = arith.constant 0 : i32
    return %c0_i32, %c0_i32_0, %c0_i32_1 : i32, i32, i32
  }
  func.func @transform_11(%arg0: i32) -> (i32, i32, i32) {
    %c0_i32 = arith.constant 0 : i32
    %c0_i32_0 = arith.constant 0 : i32
    %c0_i32_1 = arith.constant 0 : i32
    return %arg0, %c0_i32, %c0_i32_0 : i32, i32, i32
  }
}

</mosaic_0001>

<llo_original>
// kernel: tpu_custom_call.1
$region0: #{tpu_custom_call.1}
  #allocation0 [shape = 'u32[]', space=smem, size = 0x4, offset = 0x4, fixed_abs, tag = 'smem constant byte address 0x4 - core index']
  #allocation1 [shape = 'u32[144,128]{1,0:T(1,128)}', space=vmem, size = 0x12000, scoped, tag = 'internal scratch']
  %s0 = inlined_call_operand.vmem [shape: f32[4,256], index: 0, kind: input, shape index: {}]
  %s1 = inlined_call_operand.vmem [shape: f32[8,4], index: 1, kind: input, shape index: {}]
  %s2 = inlined_call_operand.vmem [shape: f32[8,1], index: 2, kind: input, shape index: {}]
  %s3 = inlined_call_operand.vmem [shape: f32[3,8,24], index: 3, kind: input, shape index: {}]
  %s4 = inlined_call_operand.vmem [shape: f32[3,8,1], index: 4, kind: input, shape index: {}]
  %s5 = inlined_call_operand.vmem [shape: f32[32,16], index: 5, kind: input, shape index: {}]
  %s6 = inlined_call_operand.vmem [shape: f32[32,1], index: 6, kind: input, shape index: {}]
  %s7 = inlined_call_operand.vmem [shape: f32[32,32], index: 7, kind: input, shape index: {}]
  %s8 = inlined_call_operand.vmem [shape: f32[32,1], index: 8, kind: input, shape index: {}]
  %s9 = inlined_call_operand.vmem [shape: f32[9,256], index: 9, kind: input, shape index: {}]
  %s10 = inlined_call_operand.vmem [shape: f32[2,256,16], index: 10, kind: input, shape index: {}]
  %s11 = inlined_call_operand.vmem [shape: f32[1,32,16], index: 11, kind: output, shape index: {}]
  %s12 = sld [smem:[#allocation0]]
  $region54: #{tpu_custom_call.1} parent=0
    _
  %s14 = ssub.s32 1, %s12
  %s15 = scalar_select 0, %s14, %s12
  // Predicated region
  $region2: #{tpu_custom_call.1} parent=0 // pred_check
    _
  $region3: #{tpu_custom_call.1} parent=0 // pred_check_branch
    %17 = sbr.rel (0) target = $region5
  $region4: #{tpu_custom_call.1} parent=0 // pred_region
    _
  $region5: #{tpu_custom_call.1} parent=0 // pred_fallthru
    _
  // Predicated region
  $region6: #{tpu_custom_call.1} parent=0 // pred_check
    _
  $region7: #{tpu_custom_call.1} parent=0 // pred_check_branch
    %19 = sbr.rel (0) target = $region9
  $region8: #{tpu_custom_call.1} parent=0 // pred_region
    _
  $region9: #{tpu_custom_call.1} parent=0 // pred_fallthru
    _
  // Predicated region
  $region10: #{tpu_custom_call.1} parent=0 // pred_check
    _
  $region11: #{tpu_custom_call.1} parent=0 // pred_check_branch
    %21 = sbr.rel (0) target = $region13
  $region12: #{tpu_custom_call.1} parent=0 // pred_region
    _
  $region13: #{tpu_custom_call.1} parent=0 // pred_fallthru
    _
  // Predicated region
  $region14: #{tpu_custom_call.1} parent=0 // pred_check
    _
  $region15: #{tpu_custom_call.1} parent=0 // pred_check_branch
    %23 = sbr.rel (0) target = $region17
  $region16: #{tpu_custom_call.1} parent=0 // pred_region
    _
  $region17: #{tpu_custom_call.1} parent=0 // pred_fallthru
    _
  // Predicated region
  $region18: #{tpu_custom_call.1} parent=0 // pred_check
    _
  $region19: #{tpu_custom_call.1} parent=0 // pred_check_branch
    %25 = sbr.rel (0) target = $region21
  $region20: #{tpu_custom_call.1} parent=0 // pred_region
    _
  $region21: #{tpu_custom_call.1} parent=0 // pred_fallthru
    _
  // Predicated region
  $region22: #{tpu_custom_call.1} parent=0 // pred_check
    _
  $region23: #{tpu_custom_call.1} parent=0 // pred_check_branch
    %27 = sbr.rel (0) target = $region25
  $region24: #{tpu_custom_call.1} parent=0 // pred_region
    _
  $region25: #{tpu_custom_call.1} parent=0 // pred_fallthru
    _
  // Predicated region
  $region26: #{tpu_custom_call.1} parent=0 // pred_check
    _
  $region27: #{tpu_custom_call.1} parent=0 // pred_check_branch
    %29 = sbr.rel (0) target = $region29
  $region28: #{tpu_custom_call.1} parent=0 // pred_region
    _
  $region29: #{tpu_custom_call.1} parent=0 // pred_fallthru
    _
  // Predicated region
  $region30: #{tpu_custom_call.1} parent=0 // pred_check
    _
  $region31: #{tpu_custom_call.1} parent=0 // pred_check_branch
    %31 = sbr.rel (0) target = $region33
  $region32: #{tpu_custom_call.1} parent=0 // pred_region
    _
  $region33: #{tpu_custom_call.1} parent=0 // pred_fallthru
    _
  // Predicated region
  $region34: #{tpu_custom_call.1} parent=0 // pred_check
    _
  $region35: #{tpu_custom_call.1} parent=0 // pred_check_branch
    %33 = sbr.rel (0) target = $region37
  $region36: #{tpu_custom_call.1} parent=0 // pred_region
    _
  $region37: #{tpu_custom_call.1} parent=0 // pred_fallthru
    _
  // Predicated region
  $region38: #{tpu_custom_call.1} parent=0 // pred_check
    _
  $region39: #{tpu_custom_call.1} parent=0 // pred_check_branch
    %35 = sbr.rel (0) target = $region41
  $region40: #{tpu_custom_call.1} parent=0 // pred_region
    _
  $region41: #{tpu_custom_call.1} parent=0 // pred_fallthru
    _
  // Predicated region
  $region42: #{tpu_custom_call.1} parent=0 // pred_check
    _
  $region43: #{tpu_custom_call.1} parent=0 // pred_check_branch
    %37 = sbr.rel (0) target = $region45
  $region44: #{tpu_custom_call.1} parent=0 // pred_region
    _
  $region45: #{tpu_custom_call.1} parent=0 // pred_fallthru
    _
  %v38 = vld [vmem:[%s1] sm:$0xff]
  %v39 = vld [vmem:[%s0] sm:$0xff]
  %v40 = vld [vmem:[%s2] sm:$0xff]
  %42 = vset.pattern.permute.xlu0 0
  %43 = vperm.xlu0 %42, %v40
  %v44 = vpop.permute.xlu0 %43
  %v47 = vcombine.high %v39, %v39
  %vm48 = vcmask 31744
  %v50 = vsel %vm48, %v38, 0
  %vm52 = vcmask 1043456
  %v53 = vsel %vm52, %v39, 0
  %v55 = vsel %vm52, %v47, 0
  %57 = vmatprep.subr.mxu0 0.0
  %58 = vmatpush1.msra.mxu0 0.0
  %59 = vmatprep.subr.mxu0 0.0
  %60 = vmatpush1.msra.mxu0 0.0
  %61 = vmatprep.subr.mxu0 0.0
  %62 = vmatpush1.msra.mxu0 0.0
  %63 = vmatprep.subr.mxu0 0.0
  %64 = vmatpush1.msra.mxu0 0.0
  %65 = vmatprep.subr.mxu0 0.0
  %66 = vmatpush1.msra.mxu0 0.0
  %67 = vmatprep.subr.mxu0 0.0
  %68 = vmatpush1.msra.mxu0 0.0
  %69 = vmatprep.subr.mxu0 0.0
  %70 = vmatpush1.msra.mxu0 0.0
  %71 = vmatprep.subr.mxu0 0.0
  %72 = vmatpush1.msra.mxu0 0.0
  %73 = vmatprep.subr.mxu0 0.0
  %74 = vmatpush1.msra.mxu0 0.0
  %75 = vmatprep.subr.mxu0 0.0
  %76 = vmatpush1.msra.mxu0 0.0
  %77 = vmatprep.subr.mxu0 0.0
  %78 = vmatpush1.msra.mxu0 0.0
  %79 = vmatprep.subr.mxu0 0.0
  %80 = vmatpush1.msra.mxu0 0.0
  %81 = vmatprep.subr.mxu0 0.0
  %82 = vmatpush1.msra.mxu0 0.0
  %83 = vmatprep.subr.mxu0 0.0
  %84 = vmatpush1.msra.mxu0 0.0
  %85 = vmatprep.subr.mxu0 0.0
  %86 = vmatpush1.msra.mxu0 0.0
  %87 = vmatprep.subr.mxu0 %v55
  %88 = vmatpush1.msra.mxu0 %v53
  %89 = vmatprep.subr.mxu0 0.0
  %90 = vmatpush2.msra.mxu0 0.0
  %91 = vmatprep.subr.mxu0 0.0
  %92 = vmatpush2.msra.mxu0 0.0
  %93 = vmatprep.subr.mxu0 0.0
  %94 = vmatpush2.msra.mxu0 0.0
  %95 = vmatprep.subr.mxu0 0.0
  %96 = vmatpush2.msra.mxu0 0.0
  %97 = vmatprep.subr.mxu0 0.0
  %98 = vmatpush2.msra.mxu0 0.0
  %99 = vmatprep.subr.mxu0 0.0
  %100 = vmatpush2.msra.mxu0 0.0
  %101 = vmatprep.subr.mxu0 0.0
  %102 = vmatpush2.msra.mxu0 0.0
  %103 = vmatprep.subr.mxu0 0.0
  %104 = vmatpush2.msra.mxu0 0.0
  %105 = vmatprep.subr.mxu0 0.0
  %106 = vmatpush2.msra.mxu0 0.0
  %107 = vmatprep.subr.mxu0 0.0
  %108 = vmatpush2.msra.mxu0 0.0
  %109 = vmatprep.subr.mxu0 0.0
  %110 = vmatpush2.msra.mxu0 0.0
  %111 = vmatprep.subr.mxu0 0.0
  %112 = vmatpush2.msra.mxu0 0.0
  %113 = vmatprep.subr.mxu0 0.0
  %114 = vmatpush2.msra.mxu0 0.0
  %115 = vmatprep.subr.mxu0 0.0
  %116 = vmatpush2.msra.mxu0 0.0
  %117 = vmatprep.subr.mxu0 0.0
  %118 = vmatpush2.msra.mxu0 0.0
  %119 = vmatprep.subr.mxu0 0.0
  %120 = vmatpush2.msra.mxu0 0.0
  %121 = vmatprep.mubr.f32.mxu0 0.0
  %122 = vmatmul.mubr.f32.gmra.mxu0 %v50
  %v123 = vpop.f32.mrf.mxu0
  %v124 = vadd.f32 %v44, %v123
  %v125 = vpop.f32.mrf.mxu0
  %v126 = vadd.f32 %v44, %v125
  %127 = vdwg.mxu0
  %128 = vrot.lane.b32.xlu0 %v124, 1
  %v129 = vpop.permute.xlu0 %128
  %130 = vrot.lane.b32.xlu0 %v126, 1
  %v131 = vpop.permute.xlu0 %130
  %v132 = vlaneseq
  %v133 = vand.u32 %v132, 127
  %vm134 = vcmp.lt.s32.totalorder %v133, 1
  %v135 = vsel %vm134, %v129, %v131
  %v136 = vsel %vm134, %v131, %v129
  %v137 = vld [vmem:[%s9] ss:$8 sm:$0x3]
  %v139 = vlaneseq
  %v140 = vshrl.u32 %v139, 7
  %v141 = vsub.s32 0, %v140
  %v142 = vrot.slane %v137, %v141
  %v143 = vlaneseq
  %v144 = vshrl.u32 %v143, 7
  %v145 = vsub.s32 1, %v144
  %v146 = vrot.slane %v137, %v145
  %v149 = vmul.f32 %v136, %v142
  %v150 = vmul.f32 %v135, %v146
  %151 = vrot.lane.b32.xlu0 %v124, 127
  %v152 = vpop.permute.xlu0 %151
  %153 = vrot.lane.b32.xlu0 %v126, 127
  %v154 = vpop.permute.xlu0 %153
  %vm155 = vcmp.lt.s32.totalorder %v133, 127
  %v156 = vsel %vm155, %v152, %v154
  %v157 = vsel %vm155, %v154, %v152
  %s158 = scalar_lea.vmem %s9, 2
  %v159 = vld [vmem:[%s158] ss:$8 sm:$0x3]
  %v161 = vlaneseq
  %v162 = vshrl.u32 %v161, 7
  %v163 = vsub.s32 0, %v162
  %v164 = vrot.slane %v159, %v163
  %v165 = vlaneseq
  %v166 = vshrl.u32 %v165, 7
  %v167 = vsub.s32 1, %v166
  %v168 = vrot.slane %v159, %v167
  %v171 = vmul.f32 %v156, %v164
  %v172 = vmul.f32 %v157, %v168
  %v173 = vld [vmem:[%s3] sm:$0xff]
  %v174 = vld [vmem:[%s4] sm:$0xff]
  %176 = vset.pattern.permute.xlu0 0
  %177 = vperm.xlu0 %176, %v174
  %v178 = vpop.permute.xlu0 %177
  %vm180 = vcmask 195584
  %v182 = vsel %vm180, %v173, 0
  %184 = vmatprep.subr.mxu0 0.0
  %185 = vmatpush1.msra.mxu0 0.0
  %186 = vmatprep.subr.mxu0 0.0
  %187 = vmatpush1.msra.mxu0 0.0
  %188 = vmatprep.subr.mxu0 0.0
  %189 = vmatpush1.msra.mxu0 0.0
  %190 = vmatprep.subr.mxu0 0.0
  %191 = vmatpush1.msra.mxu0 0.0
  %192 = vmatprep.subr.mxu0 0.0
  %193 = vmatpush1.msra.mxu0 0.0
  %194 = vmatprep.subr.mxu0 0.0
  %195 = vmatpush1.msra.mxu0 0.0
  %196 = vmatprep.subr.mxu0 0.0
  %197 = vmatpush1.msra.mxu0 0.0
  %198 = vmatprep.subr.mxu0 0.0
  %199 = vmatpush1.msra.mxu0 0.0
  %200 = vmatprep.subr.mxu0 0.0
  %201 = vmatpush1.msra.mxu0 0.0
  %202 = vmatprep.subr.mxu0 0.0
  %203 = vmatpush1.msra.mxu0 0.0
  %204 = vmatprep.subr.mxu0 0.0
  %205 = vmatpush1.msra.mxu0 0.0
  %206 = vmatprep.subr.mxu0 0.0
  %207 = vmatpush1.msra.mxu0 0.0
  %208 = vmatprep.subr.mxu0 0.0
  %209 = vmatpush1.msra.mxu0 0.0
  %210 = vmatprep.subr.mxu0 %v172
  %211 = vmatpush1.msra.mxu0 %v171
  %212 = vmatprep.subr.mxu0 %v126
  %213 = vmatpush1.msra.mxu0 %v124
  %214 = vmatprep.subr.mxu0 %v150
  %215 = vmatpush1.msra.mxu0 %v149
  %216 = vmatprep.subr.mxu0 0.0
  %217 = vmatpush2.msra.mxu0 0.0
  %218 = vmatprep.subr.mxu0 0.0
  %219 = vmatpush2.msra.mxu0 0.0
  %220 = vmatprep.subr.mxu0 0.0
  %221 = vmatpush2.msra.mxu0 0.0
  %222 = vmatprep.subr.mxu0 0.0
  %223 = vmatpush2.msra.mxu0 0.0
  %224 = vmatprep.subr.mxu0 0.0
  %225 = vmatpush2.msra.mxu0 0.0
  %226 = vmatprep.subr.mxu0 0.0
  %227 = vmatpush2.msra.mxu0 0.0
  %228 = vmatprep.subr.mxu0 0.0
  %229 = vmatpush2.msra.mxu0 0.0
  %230 = vmatprep.subr.mxu0 0.0
  %231 = vmatpush2.msra.mxu0 0.0
  %232 = vmatprep.subr.mxu0 0.0
  %233 = vmatpush2.msra.mxu0 0.0
  %234 = vmatprep.subr.mxu0 0.0
  %235 = vmatpush2.msra.mxu0 0.0
  %236 = vmatprep.subr.mxu0 0.0
  %237 = vmatpush2.msra.mxu0 0.0
  %238 = vmatprep.subr.mxu0 0.0
  %239 = vmatpush2.msra.mxu0 0.0
  %240 = vmatprep.subr.mxu0 0.0
  %241 = vmatpush2.msra.mxu0 0.0
  %242 = vmatprep.subr.mxu0 0.0
  %243 = vmatpush2.msra.mxu0 0.0
  %244 = vmatprep.subr.mxu0 0.0
  %245 = vmatpush2.msra.mxu0 0.0
  %246 = vmatprep.subr.mxu0 0.0
  %247 = vmatpush2.msra.mxu0 0.0
  %248 = vmatprep.mubr.f32.mxu0 0.0
  %249 = vmatmul.mubr.f32.gmra.mxu0 %v182
  %v250 = vpop.f32.mrf.mxu0
  %v251 = vadd.f32 %v178, %v250
  %v252 = vpop.f32.mrf.mxu0
  %v253 = vadd.f32 %v178, %v252
  %254 = vdwg.mxu0
  %v255 = vmax.f32 %v251, 0.0
  %v256 = vmax.f32 %v253, 0.0
  %257 = vrot.lane.b32.xlu0 %v255, 127
  %v258 = vpop.permute.xlu0 %257
  %259 = vrot.lane.b32.xlu0 %v256, 127
  %v260 = vpop.permute.xlu0 %259
  %v261 = vsel %vm155, %v258, %v260
  %v262 = vsel %vm155, %v260, %v258
  %v263 = vadd.f32 %v255, %v261
  %v264 = vadd.f32 %v256, %v262
  %v265 = vmul.f32 %v263, 0.5
  %v266 = vmul.f32 %v264, 0.5
  %267 = vrot.lane.b32.xlu0 %v265, 2
  %v268 = vpop.permute.xlu0 %267
  %269 = vrot.lane.b32.xlu0 %v266, 2
  %v270 = vpop.permute.xlu0 %269
  %vm271 = vcmp.lt.s32.totalorder %v133, 2
  %v272 = vsel %vm271, %v268, %v270
  %v273 = vsel %vm271, %v270, %v268
  %s274 = scalar_lea.vmem %s9, 3
  %v275 = vld [vmem:[%s274] ss:$8 sm:$0x3]
  %v277 = vlaneseq
  %v278 = vshrl.u32 %v277, 7
  %v279 = vsub.s32 0, %v278
  %v280 = vrot.slane %v275, %v279
  %v281 = vlaneseq
  %v282 = vshrl.u32 %v281, 7
  %v283 = vsub.s32 1, %v282
  %v284 = vrot.slane %v275, %v283
  %v287 = vmul.f32 %v273, %v280
  %v288 = vmul.f32 %v272, %v284
  %289 = vrot.lane.b32.xlu0 %v265, 126
  %v290 = vpop.permute.xlu0 %289
  %291 = vrot.lane.b32.xlu0 %v266, 126
  %v292 = vpop.permute.xlu0 %291
  %vm293 = vcmp.lt.s32.totalorder %v133, 126
  %v294 = vsel %vm293, %v290, %v292
  %v295 = vsel %vm293, %v292, %v290
  %s296 = scalar_lea.vmem %s9, 5
  %v297 = vld [vmem:[%s296] ss:$8 sm:$0x3]
  %v299 = vlaneseq
  %v300 = vshrl.u32 %v299, 7
  %v301 = vsub.s32 0, %v300
  %v302 = vrot.slane %v297, %v301
  %v303 = vlaneseq
  %v304 = vshrl.u32 %v303, 7
  %v305 = vsub.s32 1, %v304
  %v306 = vrot.slane %v297, %v305
  %v309 = vmul.f32 %v294, %v302
  %v310 = vmul.f32 %v295, %v306
  %s311 = scalar_lea.vmem %s3, 8
  %v312 = vld [vmem:[%s311] sm:$0xff]
  %s313 = scalar_lea.vmem %s4, 8
  %v314 = vld [vmem:[%s313] sm:$0xff]
  %316 = vset.pattern.permute.xlu0 0
  %317 = vperm.xlu0 %316, %v314
  %v318 = vpop.permute.xlu0 %317
  %v321 = vsel %vm180, %v312, 0
  %323 = vmatprep.subr.mxu0 0.0
  %324 = vmatpush1.msra.mxu0 0.0
  %325 = vmatprep.subr.mxu0 0.0
  %326 = vmatpush1.msra.mxu0 0.0
  %327 = vmatprep.subr.mxu0 0.0
  %328 = vmatpush1.msra.mxu0 0.0
  %329 = vmatprep.subr.mxu0 0.0
  %330 = vmatpush1.msra.mxu0 0.0
  %331 = vmatprep.subr.mxu0 0.0
  %332 = vmatpush1.msra.mxu0 0.0
  %333 = vmatprep.subr.mxu0 0.0
  %334 = vmatpush1.msra.mxu0 0.0
  %335 = vmatprep.subr.mxu0 0.0
  %336 = vmatpush1.msra.mxu0 0.0
  %337 = vmatprep.subr.mxu0 0.0
  %338 = vmatpush1.msra.mxu0 0.0
  %339 = vmatprep.subr.mxu0 0.0
  %340 = vmatpush1.msra.mxu0 0.0
  %341 = vmatprep.subr.mxu0 0.0
  %342 = vmatpush1.msra.mxu0 0.0
  %343 = vmatprep.subr.mxu0 0.0
  %344 = vmatpush1.msra.mxu0 0.0
  %345 = vmatprep.subr.mxu0 0.0
  %346 = vmatpush1.msra.mxu0 0.0
  %347 = vmatprep.subr.mxu0 0.0
  %348 = vmatpush1.msra.mxu0 0.0
  %349 = vmatprep.subr.mxu0 %v310
  %350 = vmatpush1.msra.mxu0 %v309
  %351 = vmatprep.subr.mxu0 %v266
  %352 = vmatpush1.msra.mxu0 %v265
  %353 = vmatprep.subr.mxu0 %v288
  %354 = vmatpush1.msra.mxu0 %v287
  %355 = vmatprep.subr.mxu0 0.0
  %356 = vmatpush2.msra.mxu0 0.0
  %357 = vmatprep.subr.mxu0 0.0
  %358 = vmatpush2.msra.mxu0 0.0
  %359 = vmatprep.subr.mxu0 0.0
  %360 = vmatpush2.msra.mxu0 0.0
  %361 = vmatprep.subr.mxu0 0.0
  %362 = vmatpush2.msra.mxu0 0.0
  %363 = vmatprep.subr.mxu0 0.0
  %364 = vmatpush2.msra.mxu0 0.0
  %365 = vmatprep.subr.mxu0 0.0
  %366 = vmatpush2.msra.mxu0 0.0
  %367 = vmatprep.subr.mxu0 0.0
  %368 = vmatpush2.msra.mxu0 0.0
  %369 = vmatprep.subr.mxu0 0.0
  %370 = vmatpush2.msra.mxu0 0.0
  %371 = vmatprep.subr.mxu0 0.0
  %372 = vmatpush2.msra.mxu0 0.0
  %373 = vmatprep.subr.mxu0 0.0
  %374 = vmatpush2.msra.mxu0 0.0
  %375 = vmatprep.subr.mxu0 0.0
  %376 = vmatpush2.msra.mxu0 0.0
  %377 = vmatprep.subr.mxu0 0.0
  %378 = vmatpush2.msra.mxu0 0.0
  %379 = vmatprep.subr.mxu0 0.0
  %380 = vmatpush2.msra.mxu0 0.0
  %381 = vmatprep.subr.mxu0 0.0
  %382 = vmatpush2.msra.mxu0 0.0
  %383 = vmatprep.subr.mxu0 0.0
  %384 = vmatpush2.msra.mxu0 0.0
  %385 = vmatprep.subr.mxu0 0.0
  %386 = vmatpush2.msra.mxu0 0.0
  %387 = vmatprep.mubr.f32.mxu0 0.0
  %388 = vmatmul.mubr.f32.gmra.mxu0 %v321
  %v389 = vpop.f32.mrf.mxu0
  %v390 = vadd.f32 %v318, %v389
  %v391 = vpop.f32.mrf.mxu0
  %v392 = vadd.f32 %v318, %v391
  %393 = vdwg.mxu0
  %v394 = vmax.f32 %v390, 0.0
  %v395 = vmax.f32 %v392, 0.0
  %396 = vrot.lane.b32.xlu0 %v394, 126
  %v397 = vpop.permute.xlu0 %396
  %398 = vrot.lane.b32.xlu0 %v395, 126
  %v399 = vpop.permute.xlu0 %398
  %v400 = vsel %vm293, %v397, %v399
  %v401 = vsel %vm293, %v399, %v397
  %v402 = vadd.f32 %v394, %v400
  %v403 = vadd.f32 %v395, %v401
  %v404 = vmul.f32 %v402, 0.5
  %v405 = vmul.f32 %v403, 0.5
  %406 = vrot.lane.b32.xlu0 %v404, 4
  %v407 = vpop.permute.xlu0 %406
  %408 = vrot.lane.b32.xlu0 %v405, 4
  %v409 = vpop.permute.xlu0 %408
  %vm410 = vcmp.lt.s32.totalorder %v133, 4
  %v411 = vsel %vm410, %v407, %v409
  %v412 = vsel %vm410, %v409, %v407
  %s413 = scalar_lea.vmem %s9, 6
  %v414 = vld [vmem:[%s413] ss:$8 sm:$0x3]
  %v416 = vlaneseq
  %v417 = vshrl.u32 %v416, 7
  %v418 = vsub.s32 0, %v417
  %v419 = vrot.slane %v414, %v418
  %v420 = vlaneseq
  %v421 = vshrl.u32 %v420, 7
  %v422 = vsub.s32 1, %v421
  %v423 = vrot.slane %v414, %v422
  %v426 = vmul.f32 %v412, %v419
  %v427 = vmul.f32 %v411, %v423
  %428 = vrot.lane.b32.xlu0 %v404, 124
  %v429 = vpop.permute.xlu0 %428
  %430 = vrot.lane.b32.xlu0 %v405, 124
  %v431 = vpop.permute.xlu0 %430
  %vm432 = vcmp.lt.s32.totalorder %v133, 124
  %v433 = vsel %vm432, %v429, %v431
  %v434 = vsel %vm432, %v431, %v429
  %s435 = scalar_lea.vmem %s9, 16
  %v436 = vld [vmem:[%s435] ss:$8 sm:$0x3]
  %v438 = vlaneseq
  %v439 = vshrl.u32 %v438, 7
  %v440 = vsub.s32 0, %v439
  %v441 = vrot.slane %v436, %v440
  %v442 = vlaneseq
  %v443 = vshrl.u32 %v442, 7
  %v444 = vsub.s32 1, %v443
  %v445 = vrot.slane %v436, %v444
  %v448 = vmul.f32 %v433, %v441
  %v449 = vmul.f32 %v434, %v445
  %s450 = scalar_lea.vmem %s3, 16
  %v451 = vld [vmem:[%s450] sm:$0xff]
  %s452 = scalar_lea.vmem %s4, 16
  %v453 = vld [vmem:[%s452] sm:$0xff]
  %455 = vset.pattern.permute.xlu0 0
  %456 = vperm.xlu0 %455, %v453
  %v457 = vpop.permute.xlu0 %456
  %v460 = vsel %vm180, %v451, 0
  %462 = vmatprep.subr.mxu0 0.0
  %463 = vmatpush1.msra.mxu0 0.0
  %464 = vmatprep.subr.mxu0 0.0
  %465 = vmatpush1.msra.mxu0 0.0
  %466 = vmatprep.subr.mxu0 0.0
  %467 = vmatpush1.msra.mxu0 0.0
  %468 = vmatprep.subr.mxu0 0.0
  %469 = vmatpush1.msra.mxu0 0.0
  %470 = vmatprep.subr.mxu0 0.0
  %471 = vmatpush1.msra.mxu0 0.0
  %472 = vmatprep.subr.mxu0 0.0
  %473 = vmatpush1.msra.mxu0 0.0
  %474 = vmatprep.subr.mxu0 0.0
  %475 = vmatpush1.msra.mxu0 0.0
  %476 = vmatprep.subr.mxu0 0.0
  %477 = vmatpush1.msra.mxu0 0.0
  %478 = vmatprep.subr.mxu0 0.0
  %479 = vmatpush1.msra.mxu0 0.0
  %480 = vmatprep.subr.mxu0 0.0
  %481 = vmatpush1.msra.mxu0 0.0
  %482 = vmatprep.subr.mxu0 0.0
  %483 = vmatpush1.msra.mxu0 0.0
  %484 = vmatprep.subr.mxu0 0.0
  %485 = vmatpush1.msra.mxu0 0.0
  %486 = vmatprep.subr.mxu0 0.0
  %487 = vmatpush1.msra.mxu0 0.0
  %488 = vmatprep.subr.mxu0 %v449
  %489 = vmatpush1.msra.mxu0 %v448
  %490 = vmatprep.subr.mxu0 %v405
  %491 = vmatpush1.msra.mxu0 %v404
  %492 = vmatprep.subr.mxu0 %v427
  %493 = vmatpush1.msra.mxu0 %v426
  %494 = vmatprep.subr.mxu0 0.0
  %495 = vmatpush2.msra.mxu0 0.0
  %496 = vmatprep.subr.mxu0 0.0
  %497 = vmatpush2.msra.mxu0 0.0
  %498 = vmatprep.subr.mxu0 0.0
  %499 = vmatpush2.msra.mxu0 0.0
  %500 = vmatprep.subr.mxu0 0.0
  %501 = vmatpush2.msra.mxu0 0.0
  %502 = vmatprep.subr.mxu0 0.0
  %503 = vmatpush2.msra.mxu0 0.0
  %504 = vmatprep.subr.mxu0 0.0
  %505 = vmatpush2.msra.mxu0 0.0
  %506 = vmatprep.subr.mxu0 0.0
  %507 = vmatpush2.msra.mxu0 0.0
  %508 = vmatprep.subr.mxu0 0.0
  %509 = vmatpush2.msra.mxu0 0.0
  %510 = vmatprep.subr.mxu0 0.0
  %511 = vmatpush2.msra.mxu0 0.0
  %512 = vmatprep.subr.mxu0 0.0
  %513 = vmatpush2.msra.mxu0 0.0
  %514 = vmatprep.subr.mxu0 0.0
  %515 = vmatpush2.msra.mxu0 0.0
  %516 = vmatprep.subr.mxu0 0.0
  %517 = vmatpush2.msra.mxu0 0.0
  %518 = vmatprep.subr.mxu0 0.0
  %519 = vmatpush2.msra.mxu0 0.0
  %520 = vmatprep.subr.mxu0 0.0
  %521 = vmatpush2.msra.mxu0 0.0
  %522 = vmatprep.subr.mxu0 0.0
  %523 = vmatpush2.msra.mxu0 0.0
  %524 = vmatprep.subr.mxu0 0.0
  %525 = vmatpush2.msra.mxu0 0.0
  %526 = vmatprep.mubr.f32.mxu0 0.0
  %527 = vmatmul.mubr.f32.gmra.mxu0 %v460
  %v528 = vpop.f32.mrf.mxu0
  %v529 = vadd.f32 %v457, %v528
  %v530 = vpop.f32.mrf.mxu0
  %v531 = vadd.f32 %v457, %v530
  %532 = vdwg.mxu0
  %v533 = vmax.f32 %v529, 0.0
  %v534 = vmax.f32 %v531, 0.0
  %535 = vrot.lane.b32.xlu0 %v533, 124
  %v536 = vpop.permute.xlu0 %535
  %537 = vrot.lane.b32.xlu0 %v534, 124
  %v538 = vpop.permute.xlu0 %537
  %v539 = vsel %vm432, %v536, %v538
  %v540 = vsel %vm432, %v538, %v536
  %v541 = vadd.f32 %v533, %v539
  %v542 = vadd.f32 %v534, %v540
  %v543 = vmul.f32 %v541, 0.5
  %v544 = vmul.f32 %v542, 0.5
  %v545 = vld [vmem:[%s10] sm:$0xff]
  %v546 = vld [vmem:[%s10 + $0x8] sm:$0xff]
  %v547 = vld [vmem:[%s10 + $0x10] sm:$0xff]
  %v548 = vld [vmem:[%s10 + $0x18] sm:$0xff]
  %v549 = vld [vmem:[%s10 + $0x20] sm:$0xff]
  %v550 = vld [vmem:[%s10 + $0x28] sm:$0xff]
  %v551 = vld [vmem:[%s10 + $0x30] sm:$0xff]
  %v552 = vld [vmem:[%s10 + $0x38] sm:$0xff]
  %v553 = vld [vmem:[%s10 + $0x40] sm:$0xff]
  %v554 = vld [vmem:[%s10 + $0x48] sm:$0xff]
  %v555 = vld [vmem:[%s10 + $0x50] sm:$0xff]
  %v556 = vld [vmem:[%s10 + $0x58] sm:$0xff]
  %v557 = vld [vmem:[%s10 + $0x60] sm:$0xff]
  %v558 = vld [vmem:[%s10 + $0x68] sm:$0xff]
  %v559 = vld [vmem:[%s10 + $0x70] sm:$0xff]
  %v560 = vld [vmem:[%s10 + $0x78] sm:$0xff]
  %v561 = vld [vmem:[%s10 + $0x80] sm:$0xff]
  %v562 = vld [vmem:[%s10 + $0x88] sm:$0xff]
  %v563 = vld [vmem:[%s10 + $0x90] sm:$0xff]
  %v564 = vld [vmem:[%s10 + $0x98] sm:$0xff]
  %v565 = vld [vmem:[%s10 + $0xa0] sm:$0xff]
  %v566 = vld [vmem:[%s10 + $0xa8] sm:$0xff]
  %v567 = vld [vmem:[%s10 + $0xb0] sm:$0xff]
  %v568 = vld [vmem:[%s10 + $0xb8] sm:$0xff]
  %v569 = vld [vmem:[%s10 + $0xc0] sm:$0xff]
  %v570 = vld [vmem:[%s10 + $0xc8] sm:$0xff]
  %v571 = vld [vmem:[%s10 + $0xd0] sm:$0xff]
  %v572 = vld [vmem:[%s10 + $0xd8] sm:$0xff]
  %v573 = vld [vmem:[%s10 + $0xe0] sm:$0xff]
  %v574 = vld [vmem:[%s10 + $0xe8] sm:$0xff]
  %v575 = vld [vmem:[%s10 + $0xf0] sm:$0xff]
  %v576 = vld [vmem:[%s10 + $0xf8] sm:$0xff]
  %577 = vmatprep.subr.mxu0 0.0
  %578 = vmatpush1.msra.mxu0 %v560
  %579 = vmatprep.subr.mxu0 0.0
  %580 = vmatpush1.msra.mxu0 %v559
  %581 = vmatprep.subr.mxu0 0.0
  %582 = vmatpush1.msra.mxu0 %v558
  %583 = vmatprep.subr.mxu0 0.0
  %584 = vmatpush1.msra.mxu0 %v557
  %585 = vmatprep.subr.mxu0 0.0
  %586 = vmatpush1.msra.mxu0 %v556
  %587 = vmatprep.subr.mxu0 0.0
  %588 = vmatpush1.msra.mxu0 %v555
  %589 = vmatprep.subr.mxu0 0.0
  %590 = vmatpush1.msra.mxu0 %v554
  %591 = vmatprep.subr.mxu0 0.0
  %592 = vmatpush1.msra.mxu0 %v553
  %593 = vmatprep.subr.mxu0 0.0
  %594 = vmatpush1.msra.mxu0 %v552
  %595 = vmatprep.subr.mxu0 0.0
  %596 = vmatpush1.msra.mxu0 %v551
  %597 = vmatprep.subr.mxu0 0.0
  %598 = vmatpush1.msra.mxu0 %v550
  %599 = vmatprep.subr.mxu0 0.0
  %600 = vmatpush1.msra.mxu0 %v549
  %601 = vmatprep.subr.mxu0 0.0
  %602 = vmatpush1.msra.mxu0 %v548
  %603 = vmatprep.subr.mxu0 0.0
  %604 = vmatpush1.msra.mxu0 %v547
  %605 = vmatprep.subr.mxu0 0.0
  %606 = vmatpush1.msra.mxu0 %v546
  %607 = vmatprep.subr.mxu0 0.0
  %608 = vmatpush1.msra.mxu0 %v545
  %609 = vmatprep.subr.mxu0 0.0
  %610 = vmatpush2.msra.mxu0 %v576
  %611 = vmatprep.subr.mxu0 0.0
  %612 = vmatpush2.msra.mxu0 %v575
  %613 = vmatprep.subr.mxu0 0.0
  %614 = vmatpush2.msra.mxu0 %v574
  %615 = vmatprep.subr.mxu0 0.0
  %616 = vmatpush2.msra.mxu0 %v573
  %617 = vmatprep.subr.mxu0 0.0
  %618 = vmatpush2.msra.mxu0 %v572
  %619 = vmatprep.subr.mxu0 0.0
  %620 = vmatpush2.msra.mxu0 %v571
  %621 = vmatprep.subr.mxu0 0.0
  %622 = vmatpush2.msra.mxu0 %v570
  %623 = vmatprep.subr.mxu0 0.0
  %624 = vmatpush2.msra.mxu0 %v569
  %625 = vmatprep.subr.mxu0 0.0
  %626 = vmatpush2.msra.mxu0 %v568
  %627 = vmatprep.subr.mxu0 0.0
  %628 = vmatpush2.msra.mxu0 %v567
  %629 = vmatprep.subr.mxu0 0.0
  %630 = vmatpush2.msra.mxu0 %v566
  %631 = vmatprep.subr.mxu0 0.0
  %632 = vmatpush2.msra.mxu0 %v565
  %633 = vmatprep.subr.mxu0 0.0
  %634 = vmatpush2.msra.mxu0 %v564
  %635 = vmatprep.subr.mxu0 0.0
  %636 = vmatpush2.msra.mxu0 %v563
  %637 = vmatprep.subr.mxu0 0.0
  %638 = vmatpush2.msra.mxu0 %v562
  %639 = vmatprep.subr.mxu0 0.0
  %640 = vmatpush2.msra.mxu0 %v561
  %641 = vmatprep.mubr.f32.mxu0 %v544
  %642 = vmatmul.mubr.f32.gmra.mxu0 %v543
  %v643 = vpop.f32.mrf.mxu0
  %v644 = vadd.f32 0.0, %v643
  %v645 = vpop.f32.mrf.mxu0
  %646 = vdwg.mxu0
  %s647 = scalar_lea.vmem %s10, 256
  %v648 = vld [vmem:[%s647] sm:$0xff]
  %v649 = vld [vmem:[%s647 + $0x8] sm:$0xff]
  %v650 = vld [vmem:[%s647 + $0x10] sm:$0xff]
  %v651 = vld [vmem:[%s647 + $0x18] sm:$0xff]
  %v652 = vld [vmem:[%s647 + $0x20] sm:$0xff]
  %v653 = vld [vmem:[%s647 + $0x28] sm:$0xff]
  %v654 = vld [vmem:[%s647 + $0x30] sm:$0xff]
  %v655 = vld [vmem:[%s647 + $0x38] sm:$0xff]
  %v656 = vld [vmem:[%s647 + $0x40] sm:$0xff]
  %v657 = vld [vmem:[%s647 + $0x48] sm:$0xff]
  %v658 = vld [vmem:[%s647 + $0x50] sm:$0xff]
  %v659 = vld [vmem:[%s647 + $0x58] sm:$0xff]
  %v660 = vld [vmem:[%s647 + $0x60] sm:$0xff]
  %v661 = vld [vmem:[%s647 + $0x68] sm:$0xff]
  %v662 = vld [vmem:[%s647 + $0x70] sm:$0xff]
  %v663 = vld [vmem:[%s647 + $0x78] sm:$0xff]
  %v664 = vld [vmem:[%s647 + $0x80] sm:$0xff]
  %v665 = vld [vmem:[%s647 + $0x88] sm:$0xff]
  %v666 = vld [vmem:[%s647 + $0x90] sm:$0xff]
  %v667 = vld [vmem:[%s647 + $0x98] sm:$0xff]
  %v668 = vld [vmem:[%s647 + $0xa0] sm:$0xff]
  %v669 = vld [vmem:[%s647 + $0xa8] sm:$0xff]
  %v670 = vld [vmem:[%s647 + $0xb0] sm:$0xff]
  %v671 = vld [vmem:[%s647 + $0xb8] sm:$0xff]
  %v672 = vld [vmem:[%s647 + $0xc0] sm:$0xff]
  %v673 = vld [vmem:[%s647 + $0xc8] sm:$0xff]
  %v674 = vld [vmem:[%s647 + $0xd0] sm:$0xff]
  %v675 = vld [vmem:[%s647 + $0xd8] sm:$0xff]
  %v676 = vld [vmem:[%s647 + $0xe0] sm:$0xff]
  %v677 = vld [vmem:[%s647 + $0xe8] sm:$0xff]
  %v678 = vld [vmem:[%s647 + $0xf0] sm:$0xff]
  %v679 = vld [vmem:[%s647 + $0xf8] sm:$0xff]
  %680 = vmatprep.subr.mxu0 0.0
  %681 = vmatpush1.msra.mxu0 %v663
  %682 = vmatprep.subr.mxu0 0.0
  %683 = vmatpush1.msra.mxu0 %v662
  %684 = vmatprep.subr.mxu0 0.0
  %685 = vmatpush1.msra.mxu0 %v661
  %686 = vmatprep.subr.mxu0 0.0
  %687 = vmatpush1.msra.mxu0 %v660
  %688 = vmatprep.subr.mxu0 0.0
  %689 = vmatpush1.msra.mxu0 %v659
  %690 = vmatprep.subr.mxu0 0.0
  %691 = vmatpush1.msra.mxu0 %v658
  %692 = vmatprep.subr.mxu0 0.0
  %693 = vmatpush1.msra.mxu0 %v657
  %694 = vmatprep.subr.mxu0 0.0
  %695 = vmatpush1.msra.mxu0 %v656
  %696 = vmatprep.subr.mxu0 0.0
  %697 = vmatpush1.msra.mxu0 %v655
  %698 = vmatprep.subr.mxu0 0.0
  %699 = vmatpush1.msra.mxu0 %v654
  %700 = vmatprep.subr.mxu0 0.0
  %701 = vmatpush1.msra.mxu0 %v653
  %702 = vmatprep.subr.mxu0 0.0
  %703 = vmatpush1.msra.mxu0 %v652
  %704 = vmatprep.subr.mxu0 0.0
  %705 = vmatpush1.msra.mxu0 %v651
  %706 = vmatprep.subr.mxu0 0.0
  %707 = vmatpush1.msra.mxu0 %v650
  %708 = vmatprep.subr.mxu0 0.0
  %709 = vmatpush1.msra.mxu0 %v649
  %710 = vmatprep.subr.mxu0 0.0
  %711 = vmatpush1.msra.mxu0 %v648
  %712 = vmatprep.subr.mxu0 0.0
  %713 = vmatpush2.msra.mxu0 %v679
  %714 = vmatprep.subr.mxu0 0.0
  %715 = vmatpush2.msra.mxu0 %v678
  %716 = vmatprep.subr.mxu0 0.0
  %717 = vmatpush2.msra.mxu0 %v677
  %718 = vmatprep.subr.mxu0 0.0
  %719 = vmatpush2.msra.mxu0 %v676
  %720 = vmatprep.subr.mxu0 0.0
  %721 = vmatpush2.msra.mxu0 %v675
  %722 = vmatprep.subr.mxu0 0.0
  %723 = vmatpush2.msra.mxu0 %v674
  %724 = vmatprep.subr.mxu0 0.0
  %725 = vmatpush2.msra.mxu0 %v673
  %726 = vmatprep.subr.mxu0 0.0
  %727 = vmatpush2.msra.mxu0 %v672
  %728 = vmatprep.subr.mxu0 0.0
  %729 = vmatpush2.msra.mxu0 %v671
  %730 = vmatprep.subr.mxu0 0.0
  %731 = vmatpush2.msra.mxu0 %v670
  %732 = vmatprep.subr.mxu0 0.0
  %733 = vmatpush2.msra.mxu0 %v669
  %734 = vmatprep.subr.mxu0 0.0
  %735 = vmatpush2.msra.mxu0 %v668
  %736 = vmatprep.subr.mxu0 0.0
  %737 = vmatpush2.msra.mxu0 %v667
  %738 = vmatprep.subr.mxu0 0.0
  %739 = vmatpush2.msra.mxu0 %v666
  %740 = vmatprep.subr.mxu0 0.0
  %741 = vmatpush2.msra.mxu0 %v665
  %742 = vmatprep.subr.mxu0 0.0
  %743 = vmatpush2.msra.mxu0 %v664
  %744 = vmatprep.mubr.f32.mxu0 %v544
  %745 = vmatmul.mubr.f32.gmra.mxu0 %v543
  %v746 = vpop.f32.mrf.mxu0
  %v747 = vadd.f32 0.0, %v746
  %v748 = vpop.f32.mrf.mxu0
  %749 = vdwg.mxu0
  %v750 = vld [vmem:[%s5] sm:$0xff]
  %v751 = vld [vmem:[%s5 + $0x8] sm:$0xff]
  %v752 = vld [vmem:[%s5 + $0x10] sm:$0xff]
  %v753 = vld [vmem:[%s5 + $0x18] sm:$0xff]
  %v754 = vld [vmem:[%s6] sm:$0xff]
  %v755 = vld [vmem:[%s6 + $0x8] sm:$0xff]
  %v756 = vld [vmem:[%s6 + $0x10] sm:$0xff]
  %v757 = vld [vmem:[%s6 + $0x18] sm:$0xff]
  %759 = vset.pattern.permute.xlu0 0
  %760 = vperm.xlu0 %759, %v754
  %v761 = vpop.permute.xlu0 %760
  %764 = vset.pattern.permute.xlu0 0
  %765 = vperm.xlu0 %764, %v755
  %v766 = vpop.permute.xlu0 %765
  %769 = vset.pattern.permute.xlu0 0
  %770 = vperm.xlu0 %769, %v756
  %v771 = vpop.permute.xlu0 %770
  %774 = vset.pattern.permute.xlu0 0
  %775 = vperm.xlu0 %774, %v757
  %v776 = vpop.permute.xlu0 %775
  %vm778 = vcmask 130048
  %v780 = vsel %vm778, %v750, 0
  %v783 = vsel %vm778, %v751, 0
  %v786 = vsel %vm778, %v752, 0
  %v789 = vsel %vm778, %v753, 0
  %791 = vmatprep.subr.mxu0 0.0
  %792 = vmatpush1.msra.mxu0 0.0
  %793 = vmatprep.subr.mxu0 0.0
  %794 = vmatpush1.msra.mxu0 0.0
  %795 = vmatprep.subr.mxu0 0.0
  %796 = vmatpush1.msra.mxu0 0.0
  %797 = vmatprep.subr.mxu0 0.0
  %798 = vmatpush1.msra.mxu0 0.0
  %799 = vmatprep.subr.mxu0 0.0
  %800 = vmatpush1.msra.mxu0 0.0
  %801 = vmatprep.subr.mxu0 0.0
  %802 = vmatpush1.msra.mxu0 0.0
  %803 = vmatprep.subr.mxu0 0.0
  %804 = vmatpush1.msra.mxu0 0.0
  %805 = vmatprep.subr.mxu0 0.0
  %806 = vmatpush1.msra.mxu0 0.0
  %807 = vmatprep.subr.mxu0 0.0
  %808 = vmatpush1.msra.mxu0 0.0
  %809 = vmatprep.subr.mxu0 0.0
  %810 = vmatpush1.msra.mxu0 0.0
  %811 = vmatprep.subr.mxu0 0.0
  %812 = vmatpush1.msra.mxu0 0.0
  %813 = vmatprep.subr.mxu0 0.0
  %814 = vmatpush1.msra.mxu0 0.0
  %815 = vmatprep.subr.mxu0 0.0
  %816 = vmatpush1.msra.mxu0 0.0
  %817 = vmatprep.subr.mxu0 0.0
  %818 = vmatpush1.msra.mxu0 0.0
  %819 = vmatprep.subr.mxu0 0.0
  %820 = vmatpush1.msra.mxu0 %v747
  %821 = vmatprep.subr.mxu0 0.0
  %822 = vmatpush1.msra.mxu0 %v644
  %823 = vmatprep.subr.mxu0 0.0
  %824 = vmatpush2.msra.mxu0 0.0
  %825 = vmatprep.subr.mxu0 0.0
  %826 = vmatpush2.msra.mxu0 0.0
  %827 = vmatprep.subr.mxu0 0.0
  %828 = vmatpush2.msra.mxu0 0.0
  %829 = vmatprep.subr.mxu0 0.0
  %830 = vmatpush2.msra.mxu0 0.0
  %831 = vmatprep.subr.mxu0 0.0
  %832 = vmatpush2.msra.mxu0 0.0
  %833 = vmatprep.subr.mxu0 0.0
  %834 = vmatpush2.msra.mxu0 0.0
  %835 = vmatprep.subr.mxu0 0.0
  %836 = vmatpush2.msra.mxu0 0.0
  %837 = vmatprep.subr.mxu0 0.0
  %838 = vmatpush2.msra.mxu0 0.0
  %839 = vmatprep.subr.mxu0 0.0
  %840 = vmatpush2.msra.mxu0 0.0
  %841 = vmatprep.subr.mxu0 0.0
  %842 = vmatpush2.msra.mxu0 0.0
  %843 = vmatprep.subr.mxu0 0.0
  %844 = vmatpush2.msra.mxu0 0.0
  %845 = vmatprep.subr.mxu0 0.0
  %846 = vmatpush2.msra.mxu0 0.0
  %847 = vmatprep.subr.mxu0 0.0
  %848 = vmatpush2.msra.mxu0 0.0
  %849 = vmatprep.subr.mxu0 0.0
  %850 = vmatpush2.msra.mxu0 0.0
  %851 = vmatprep.subr.mxu0 0.0
  %852 = vmatpush2.msra.mxu0 0.0
  %853 = vmatprep.subr.mxu0 0.0
  %854 = vmatpush2.msra.mxu0 0.0
  %855 = vmatprep.mubr.f32.mxu0 0.0
  %856 = vmatmul.mubr.f32.gmra.mxu0 %v780
  %v857 = vpop.f32.mrf.mxu0
  %v858 = vadd.f32 %v761, %v857
  %v859 = vpop.f32.mrf.mxu0
  %860 = vmatprep.mubr.f32.mxu0 0.0
  %861 = vmatmul.mubr.f32.gmra.mxu0 %v783
  %v862 = vpop.f32.mrf.mxu0
  %v863 = vadd.f32 %v766, %v862
  %v864 = vpop.f32.mrf.mxu0
  %865 = vmatprep.mubr.f32.mxu0 0.0
  %866 = vmatmul.mubr.f32.gmra.mxu0 %v786
  %v867 = vpop.f32.mrf.mxu0
  %v868 = vadd.f32 %v771, %v867
  %v869 = vpop.f32.mrf.mxu0
  %870 = vmatprep.mubr.f32.mxu0 0.0
  %871 = vmatmul.mubr.f32.gmra.mxu0 %v789
  %v872 = vpop.f32.mrf.mxu0
  %v873 = vadd.f32 %v776, %v872
  %v874 = vpop.f32.mrf.mxu0
  %875 = vdwg.mxu0
  %v876 = vmax.f32 %v858, 0.0
  %v877 = vmax.f32 %v863, 0.0
  %v878 = vmax.f32 %v868, 0.0
  %v879 = vmax.f32 %v873, 0.0
  %v880 = vld [vmem:[%s7] sm:$0xff]
  %v881 = vld [vmem:[%s7 + $0x8] sm:$0xff]
  %v882 = vld [vmem:[%s7 + $0x10] sm:$0xff]
  %v883 = vld [vmem:[%s7 + $0x18] sm:$0xff]
  %v884 = vld [vmem:[%s8] sm:$0xff]
  %v885 = vld [vmem:[%s8 + $0x8] sm:$0xff]
  %v886 = vld [vmem:[%s8 + $0x10] sm:$0xff]
  %v887 = vld [vmem:[%s8 + $0x18] sm:$0xff]
  %889 = vset.pattern.permute.xlu0 0
  %890 = vperm.xlu0 %889, %v884
  %v891 = vpop.permute.xlu0 %890
  %894 = vset.pattern.permute.xlu0 0
  %895 = vperm.xlu0 %894, %v885
  %v896 = vpop.permute.xlu0 %895
  %899 = vset.pattern.permute.xlu0 0
  %900 = vperm.xlu0 %899, %v886
  %v901 = vpop.permute.xlu0 %900
  %904 = vset.pattern.permute.xlu0 0
  %905 = vperm.xlu0 %904, %v887
  %v906 = vpop.permute.xlu0 %905
  %vm908 = vcmask 261120
  %v910 = vsel %vm908, %v880, 0
  %v913 = vsel %vm908, %v881, 0
  %v916 = vsel %vm908, %v882, 0
  %v919 = vsel %vm908, %v883, 0
  %921 = vmatprep.subr.mxu0 0.0
  %922 = vmatpush1.msra.mxu0 0.0
  %923 = vmatprep.subr.mxu0 0.0
  %924 = vmatpush1.msra.mxu0 0.0
  %925 = vmatprep.subr.mxu0 0.0
  %926 = vmatpush1.msra.mxu0 0.0
  %927 = vmatprep.subr.mxu0 0.0
  %928 = vmatpush1.msra.mxu0 0.0
  %929 = vmatprep.subr.mxu0 0.0
  %930 = vmatpush1.msra.mxu0 0.0
  %931 = vmatprep.subr.mxu0 0.0
  %932 = vmatpush1.msra.mxu0 0.0
  %933 = vmatprep.subr.mxu0 0.0
  %934 = vmatpush1.msra.mxu0 0.0
  %935 = vmatprep.subr.mxu0 0.0
  %936 = vmatpush1.msra.mxu0 0.0
  %937 = vmatprep.subr.mxu0 0.0
  %938 = vmatpush1.msra.mxu0 0.0
  %939 = vmatprep.subr.mxu0 0.0
  %940 = vmatpush1.msra.mxu0 0.0
  %941 = vmatprep.subr.mxu0 0.0
  %942 = vmatpush1.msra.mxu0 0.0
  %943 = vmatprep.subr.mxu0 0.0
  %944 = vmatpush1.msra.mxu0 0.0
  %945 = vmatprep.subr.mxu0 0.0
  %946 = vmatpush1.msra.mxu0 %v879
  %947 = vmatprep.subr.mxu0 0.0
  %948 = vmatpush1.msra.mxu0 %v878
  %949 = vmatprep.subr.mxu0 0.0
  %950 = vmatpush1.msra.mxu0 %v877
  %951 = vmatprep.subr.mxu0 0.0
  %952 = vmatpush1.msra.mxu0 %v876
  %953 = vmatprep.subr.mxu0 0.0
  %954 = vmatpush2.msra.mxu0 0.0
  %955 = vmatprep.subr.mxu0 0.0
  %956 = vmatpush2.msra.mxu0 0.0
  %957 = vmatprep.subr.mxu0 0.0
  %958 = vmatpush2.msra.mxu0 0.0
  %959 = vmatprep.subr.mxu0 0.0
  %960 = vmatpush2.msra.mxu0 0.0
  %961 = vmatprep.subr.mxu0 0.0
  %962 = vmatpush2.msra.mxu0 0.0
  %963 = vmatprep.subr.mxu0 0.0
  %964 = vmatpush2.msra.mxu0 0.0
  %965 = vmatprep.subr.mxu0 0.0
  %966 = vmatpush2.msra.mxu0 0.0
  %967 = vmatprep.subr.mxu0 0.0
  %968 = vmatpush2.msra.mxu0 0.0
  %969 = vmatprep.subr.mxu0 0.0
  %970 = vmatpush2.msra.mxu0 0.0
  %971 = vmatprep.subr.mxu0 0.0
  %972 = vmatpush2.msra.mxu0 0.0
  %973 = vmatprep.subr.mxu0 0.0
  %974 = vmatpush2.msra.mxu0 0.0
  %975 = vmatprep.subr.mxu0 0.0
  %976 = vmatpush2.msra.mxu0 0.0
  %977 = vmatprep.subr.mxu0 0.0
  %978 = vmatpush2.msra.mxu0 0.0
  %979 = vmatprep.subr.mxu0 0.0
  %980 = vmatpush2.msra.mxu0 0.0
  %981 = vmatprep.subr.mxu0 0.0
  %982 = vmatpush2.msra.mxu0 0.0
  %983 = vmatprep.subr.mxu0 0.0
  %984 = vmatpush2.msra.mxu0 0.0
  %985 = vmatprep.mubr.f32.mxu0 0.0
  %986 = vmatmul.mubr.f32.gmra.mxu0 %v910
  %v987 = vpop.f32.mrf.mxu0
  %v988 = vadd.f32 %v891, %v987
  %v989 = vpop.f32.mrf.mxu0
  %990 = vmatprep.mubr.f32.mxu0 0.0
  %991 = vmatmul.mubr.f32.gmra.mxu0 %v913
  %v992 = vpop.f32.mrf.mxu0
  %v993 = vadd.f32 %v896, %v992
  %v994 = vpop.f32.mrf.mxu0
  %995 = vmatprep.mubr.f32.mxu0 0.0
  %996 = vmatmul.mubr.f32.gmra.mxu0 %v916
  %v997 = vpop.f32.mrf.mxu0
  %v998 = vadd.f32 %v901, %v997
  %v999 = vpop.f32.mrf.mxu0
  %1000 = vmatprep.mubr.f32.mxu0 0.0
  %1001 = vmatmul.mubr.f32.gmra.mxu0 %v919
  %v1002 = vpop.f32.mrf.mxu0
  %v1003 = vadd.f32 %v906, %v1002
  %v1004 = vpop.f32.mrf.mxu0
  %1005 = vdwg.mxu0
  %1006 = vst.msk [vmem:[%s11] sm:$0xff] %vm778, %v988
  %1007 = vst.msk [vmem:[%s11 + $0x8] sm:$0xff] %vm778, %v993
  %1008 = vst.msk [vmem:[%s11 + $0x10] sm:$0xff] %vm778, %v998
  %1009 = vst.msk [vmem:[%s11 + $0x18] sm:$0xff] %vm778, %v1003
  // Predicated region
  $region46: #{tpu_custom_call.1} parent=0 // pred_check
    _
  $region47: #{tpu_custom_call.1} parent=0 // pred_check_branch
    %1011 = sbr.rel (0) target = $region49
  $region48: #{tpu_custom_call.1} parent=0 // pred_region
    _
  $region49: #{tpu_custom_call.1} parent=0 // pred_fallthru
    _
  // Predicated region
  $region50: #{tpu_custom_call.1} parent=0 // pred_check
    _
  $region51: #{tpu_custom_call.1} parent=0 // pred_check_branch
    %1013 = sbr.rel (0) target = $region53
  $region52: #{tpu_custom_call.1} parent=0 // pred_region
    _
  $region53: #{tpu_custom_call.1} parent=0 // pred_fallthru
    _

</llo_original>
